<compile_context>
chip_gen: v7x
topology: tpu7x:2x2x1
jax: 0.10.0
libtpu: 0.0.40
codegen_flags: <defaults>
</compile_context>

<pallas_src>
import jax
import jax.numpy as jnp
from jax import lax
from jax.experimental import pallas as pl
from jax.experimental.pallas import tpu as pltpu


# ----------------------------- kernels ------------------------------------ #

def _outconv_vpu_kernel(x_ref, w_ref, b_ref, o_ref):
    """Small-channel path: SMEM-scalar x vector FMAs on the VPU, f32 accumulate.

    x_ref: (Nb, Cin, T) VMEM; w_ref: (Cout, Cin) SMEM f32; b_ref: (Cout,) SMEM f32;
    o_ref: (Nb, Cout, T) VMEM.
    """
    cin = x_ref.shape[1]
    cout = o_ref.shape[1]
    # One f32 slice per input channel; reused across all output channels.
    xs = [x_ref[:, ci:ci + 1, :].astype(jnp.float32) for ci in range(cin)]
    rows = []
    for co in range(cout):
        acc = xs[0] * w_ref[co, 0] + b_ref[co]
        for ci in range(1, cin):
            acc = acc + xs[ci] * w_ref[co, ci]
        rows.append(acc)
    o_ref[...] = jnp.concatenate(rows, axis=1).astype(o_ref.dtype)


def _outconv_mxu_kernel(x_ref, w_ref, b_ref, o_ref):
    """Large-channel path: (Cout, Cin) @ (Cin, T) on the MXU, f32 accumulate.

    x_ref: (Nb, Cin, T); w_ref: (Cout, Cin); b_ref: (Cout, 1); o_ref: (Nb, Cout, T).
    Nb is kept small (<= 8) on this path, so a static unroll is fine.
    """
    w = w_ref[...]
    b = b_ref[...].astype(jnp.float32)
    for i in range(x_ref.shape[0]):
        acc = lax.dot_general(
            w, x_ref[i],
            dimension_numbers=(((1,), (0,)), ((), ())),
            preferred_element_type=jnp.float32,
            precision=lax.Precision.HIGHEST)
        o_ref[i] = (acc + b).astype(o_ref.dtype)


# --------------------------- tiling helpers -------------------------------- #

def _ceil_to(v, m):
    return -(-v // m) * m


def _pad_rows(c, itemsize):
    """Sublane-padded row count for a channel dim of the given element size."""
    granule = 8 * max(1, 4 // max(1, itemsize))     # 8 (f32), 16 (bf16), 32 (int8)
    return _ceil_to(c, granule)


def _vmem_budget():
    """Per-generation (block_budget, vmem_limit_bytes)."""
    try:
        total = int(pltpu.get_tpu_info().vmem_capacity_bytes)
    except Exception:
        total = 64 * 1024 * 1024                    # conservative (v7x-sized VMEM)
    # Double-buffered streaming blocks; leave headroom for in-kernel temporaries
    # and Mosaic internal scratch (v7x only has 64 MiB total).
    block_budget = min(24 << 20, total // 4)        # 24 MiB on v5e/v6e, 16 MiB on v7x
    vmem_limit = max(32 << 20, min(total * 3 // 4, block_budget * 3))
    return block_budget, vmem_limit


def _select_blocks(n, hw, cin, cout, in_isz, out_isz, budget, max_nb=None):
    """Pick (Nb, tile_hw, hw_pad): padding-aware, budget-bound, >=2 grid steps."""

    def blk_bytes(nb, t):                           # double-buffered x + out blocks
        tpad = _ceil_to(t, 128)
        return 2 * nb * (_pad_rows(cin, in_isz) * tpad * in_isz
                         + _pad_rows(cout, out_isz) * tpad * out_isz)

    per_col = blk_bytes(1, 128) // 128              # padded bytes per spatial column
    cap_cols = max(128, (budget // per_col) // 128 * 128)

    if hw % 128 == 0:
        t = min(hw, cap_cols)
        while hw % t != 0:                          # terminates at 128
            t -= 128
        hw_pad = hw
    elif blk_bytes(1, hw) <= budget:
        t = hw                                      # single full-spatial block
        hw_pad = hw
    else:
        # Ragged large image: pad the flattened spatial axis to a multiple of a
        # lane-dense tile (one extra pass over x, but blocks stay within budget).
        t = cap_cols
        hw_pad = _ceil_to(hw, t)

    spatial_steps = hw_pad // t

    # Fold batch into the block when a single spatial tile covers the image.
    nb = 1
    if spatial_steps == 1 and n > 1:
        per_image = max(1, blk_bytes(1, t))
        nb_cap = max(1, budget // per_image)
        if max_nb is not None:
            nb_cap = min(nb_cap, max_nb)
        for cand in range(min(n, nb_cap), 0, -1):
            if n % cand == 0:
                nb = cand
                break

    # Guarantee >= 2 grid steps (both v7x TensorCores + pipeline overlap).
    if (n // nb) * spatial_steps < 2:
        if nb > 1:
            for cand in range(n // 2, 0, -1):
                if n % cand == 0:
                    nb = cand
                    break
        elif spatial_steps == 1 and t % 256 == 0:
            t //= 2                                 # hw_pad == old t -> exactly 2 steps

    return nb, t, hw_pad


# ------------------------------ wrapper ------------------------------------ #

def outconv_1x1(x_nchw, weight, bias, *, io_dtype=None, out_dtype=None):
    """x_nchw: (N, Cin, H, W); weight: (Cout, Cin, 1, 1); bias: (Cout,)."""
    N, Cin, H, W = x_nchw.shape
    Cout = weight.shape[0]
    HW = H * W
    if out_dtype is None:
        out_dtype = x_nchw.dtype

    x3 = x_nchw.reshape(N, Cin, HW)                 # free reshape, NCHW-native
    if io_dtype is not None and x3.dtype != jnp.dtype(io_dtype):
        x3 = x3.astype(io_dtype)                    # halves HBM reads for bf16
    w2 = weight.reshape(Cout, Cin)

    in_isz = jnp.dtype(x3.dtype).itemsize
    out_isz = jnp.dtype(out_dtype).itemsize

    use_vpu = (Cin <= 8) and (Cout <= 8)
    budget, vmem_limit = _vmem_budget()
    nb, tile_hw, hw_pad = _select_blocks(
        N, HW, Cin, Cout, in_isz, out_isz, budget,
        max_nb=None if use_vpu else 8)              # MXU path unrolls over Nb

    if hw_pad != HW:
        x3 = jnp.pad(x3, ((0, 0), (0, 0), (0, hw_pad - HW)))

    grid = (N // nb, hw_pad // tile_hw)

    x_spec = pl.BlockSpec((nb, Cin, tile_hw), lambda ni, si: (ni, 0, si))
    out_spec = pl.BlockSpec((nb, Cout, tile_hw), lambda ni, si: (ni, 0, si))

    if use_vpu:
        kernel = _outconv_vpu_kernel
        # Tiny weights/bias live in SMEM as f32 scalars (no padded VMEM layout,
        # no per-tile sublane loads); accuracy stays f32 even for bf16 x.
        w_arg = w2.astype(jnp.float32)              # (Cout, Cin)
        b_arg = bias.astype(jnp.float32)            # (Cout,)
        w_spec = pl.BlockSpec(memory_space=pltpu.MemorySpace.SMEM)
        b_spec = pl.BlockSpec(memory_space=pltpu.MemorySpace.SMEM)
    else:
        kernel = _outconv_mxu_kernel
        w_arg = w2.astype(x3.dtype)                 # (Cout, Cin), matches x for MXU
        b_arg = bias.astype(jnp.float32).reshape(Cout, 1)
        w_spec = pl.BlockSpec((Cout, Cin), lambda ni, si: (0, 0))
        b_spec = pl.BlockSpec((Cout, 1), lambda ni, si: (0, 0))

    cost = pl.CostEstimate(
        flops=int(2 * N * Cin * Cout * HW),
        transcendentals=0,
        bytes_accessed=int(N * Cin * hw_pad * in_isz + N * Cout * hw_pad * out_isz
                           + w_arg.size * jnp.dtype(w_arg.dtype).itemsize
                           + b_arg.size * jnp.dtype(b_arg.dtype).itemsize))

    out3 = pl.pallas_call(
        kernel,
        out_shape=jax.ShapeDtypeStruct((N, Cout, hw_pad), out_dtype),
        grid=grid,
        in_specs=[x_spec, w_spec, b_spec],
        out_specs=out_spec,
        compiler_params=pltpu.CompilerParams(
            dimension_semantics=("parallel", "parallel"),
            vmem_limit_bytes=int(vmem_limit)),
        cost_estimate=cost,
    )(x3, w_arg, b_arg)

    if hw_pad != HW:
        out3 = out3[:, :, :HW]
    return out3.reshape(N, Cout, H, W)              # free reshape back to NCHW


# ------------------------------ test setup --------------------------------- #

def _init_params(key, in_channels, out_channels, dtype=jnp.float32):
    # Deterministic init mimicking nn.Conv2d defaults (kaiming-uniform-ish).
    kw, kb = jax.random.split(key)
    fan_in = in_channels * 1 * 1
    bound = 1.0 / jnp.sqrt(fan_in)
    weight = jax.random.uniform(
        kw, (out_channels, in_channels, 1, 1), dtype, -bound, bound)
    bias = jax.random.uniform(kb, (out_channels,), dtype, -bound, bound)
    return weight, bias


if __name__ == "__main__":
    key = jax.random.PRNGKey(0)
    k_x, k_p, k_x2, k_p2 = jax.random.split(key, 4)

    # OutConv-style config (small channels) -> VPU path, f32 I/O.
    N, Cin, H, W = 2, 4, 16, 16
    Cout = 3
    x = jax.random.normal(k_x, (N, Cin, H, W), jnp.float32)
    weight, bias = _init_params(k_p, Cin, Cout)

    y = jax.block_until_ready(outconv_1x1(x, weight, bias))
    y_ref = (jnp.einsum("nchw,oc->nohw", x, weight.reshape(Cout, Cin))
             + bias.reshape(1, Cout, 1, 1))
    assert y.shape == (N, Cout, H, W)
    assert jnp.allclose(y, y_ref, atol=1e-5, rtol=1e-5)

    # Same config with bf16 I/O (halves HBM traffic on v6e/v7x); f32 accumulate.
    y_bf = jax.block_until_ready(
        outconv_1x1(x, weight, bias, io_dtype=jnp.bfloat16, out_dtype=jnp.bfloat16))
    assert y_bf.dtype == jnp.bfloat16
    assert jnp.allclose(y_bf.astype(jnp.float32), y_ref, atol=1e-1, rtol=1e-1)

    # Larger channels -> MXU path (precision=HIGHEST keeps f32-level accuracy).
    Cin2, Cout2 = 64, 64
    x2 = jax.random.normal(k_x2, (N, Cin2, H, W), jnp.float32)
    w2, b2 = _init_params(k_p2, Cin2, Cout2)
    y2 = jax.block_until_ready(outconv_1x1(x2, w2, b2))
    y2_ref = (jnp.einsum("nchw,oc->nohw", x2, w2.reshape(Cout2, Cin2))
              + b2.reshape(1, Cout2, 1, 1))
    assert y2.shape == (N, Cout2, H, W)
    assert jnp.allclose(y2, y2_ref, atol=2e-2, rtol=2e-2)

    print("KERNEL_OK")
</pallas_src>

<mosaic_0001>
module attributes {stable_mosaic.version = 11 : i64} {
  func.func @_outconv_vpu_kernel(%arg0: i32, %arg1: i32, %arg2: memref<1x4x256xf32, #tpu.memory_space<vmem>>, %arg3: memref<3x4xf32, #tpu.memory_space<smem>>, %arg4: memref<3xf32, #tpu.memory_space<smem>>, %arg5: memref<1x3x256xf32, #tpu.memory_space<vmem>>) attributes {dimension_semantics = [#tpu.dimension_semantics<parallel>, #tpu.dimension_semantics<parallel>], iteration_bounds = array<i64: 2, 1>, scalar_prefetch = 0 : i64, scratch_operands = 0 : i64, tpu.core_type = #tpu.core_type<tc>, window_params = [{transform_indices = @transform_0, window_bounds = array<i64: 1, 4, 256>}, {transform_indices = @transform_1, window_bounds = array<i64: 3, 4>}, {transform_indices = @transform_2, window_bounds = array<i64: 3>}, {transform_indices = @transform_3, window_bounds = array<i64: 1, 3, 256>}]} {
    %c0 = arith.constant 0 : index
    %c0_0 = arith.constant 0 : index
    %c0_1 = arith.constant 0 : index
    %0 = vector.load %arg2[%c0, %c0_0, %c0_1] : memref<1x4x256xf32, #tpu.memory_space<vmem>>, vector<1x1x256xf32>
    %c0_2 = arith.constant 0 : index
    %c1 = arith.constant 1 : index
    %c0_3 = arith.constant 0 : index
    %1 = vector.load %arg2[%c0_2, %c1, %c0_3] : memref<1x4x256xf32, #tpu.memory_space<vmem>>, vector<1x1x256xf32>
    %c0_4 = arith.constant 0 : index
    %c2 = arith.constant 2 : index
    %c0_5 = arith.constant 0 : index
    %2 = vector.load %arg2[%c0_4, %c2, %c0_5] : memref<1x4x256xf32, #tpu.memory_space<vmem>>, vector<1x1x256xf32>
    %c0_6 = arith.constant 0 : index
    %c3 = arith.constant 3 : index
    %c0_7 = arith.constant 0 : index
    %3 = vector.load %arg2[%c0_6, %c3, %c0_7] : memref<1x4x256xf32, #tpu.memory_space<vmem>>, vector<1x1x256xf32>
    %c0_8 = arith.constant 0 : index
    %c0_9 = arith.constant 0 : index
    %4 = memref.load %arg3[%c0_8, %c0_9] : memref<3x4xf32, #tpu.memory_space<smem>>
    %5 = vector.broadcast %4 : f32 to vector<1x1x256xf32>
    %6 = arith.mulf %0, %5 : vector<1x1x256xf32>
    %c0_10 = arith.constant 0 : index
    %7 = memref.load %arg4[%c0_10] : memref<3xf32, #tpu.memory_space<smem>>
    %8 = vector.broadcast %7 : f32 to vector<1x1x256xf32>
    %9 = arith.addf %6, %8 : vector<1x1x256xf32>
    %c0_11 = arith.constant 0 : index
    %c1_12 = arith.constant 1 : index
    %10 = memref.load %arg3[%c0_11, %c1_12] : memref<3x4xf32, #tpu.memory_space<smem>>
    %11 = vector.broadcast %10 : f32 to vector<1x1x256xf32>
    %12 = arith.mulf %1, %11 : vector<1x1x256xf32>
    %13 = arith.addf %9, %12 : vector<1x1x256xf32>
    %c0_13 = arith.constant 0 : index
    %c2_14 = arith.constant 2 : index
    %14 = memref.load %arg3[%c0_13, %c2_14] : memref<3x4xf32, #tpu.memory_space<smem>>
    %15 = vector.broadcast %14 : f32 to vector<1x1x256xf32>
    %16 = arith.mulf %2, %15 : vector<1x1x256xf32>
    %17 = arith.addf %13, %16 : vector<1x1x256xf32>
    %c0_15 = arith.constant 0 : index
    %c3_16 = arith.constant 3 : index
    %18 = memref.load %arg3[%c0_15, %c3_16] : memref<3x4xf32, #tpu.memory_space<smem>>
    %19 = vector.broadcast %18 : f32 to vector<1x1x256xf32>
    %20 = arith.mulf %3, %19 : vector<1x1x256xf32>
    %21 = arith.addf %17, %20 : vector<1x1x256xf32>
    %c1_17 = arith.constant 1 : index
    %c0_18 = arith.constant 0 : index
    %22 = memref.load %arg3[%c1_17, %c0_18] : memref<3x4xf32, #tpu.memory_space<smem>>
    %23 = vector.broadcast %22 : f32 to vector<1x1x256xf32>
    %24 = arith.mulf %0, %23 : vector<1x1x256xf32>
    %c1_19 = arith.constant 1 : index
    %25 = memref.load %arg4[%c1_19] : memref<3xf32, #tpu.memory_space<smem>>
    %26 = vector.broadcast %25 : f32 to vector<1x1x256xf32>
    %27 = arith.addf %24, %26 : vector<1x1x256xf32>
    %c1_20 = arith.constant 1 : index
    %c1_21 = arith.constant 1 : index
    %28 = memref.load %arg3[%c1_20, %c1_21] : memref<3x4xf32, #tpu.memory_space<smem>>
    %29 = vector.broadcast %28 : f32 to vector<1x1x256xf32>
    %30 = arith.mulf %1, %29 : vector<1x1x256xf32>
    %31 = arith.addf %27, %30 : vector<1x1x256xf32>
    %c1_22 = arith.constant 1 : index
    %c2_23 = arith.constant 2 : index
    %32 = memref.load %arg3[%c1_22, %c2_23] : memref<3x4xf32, #tpu.memory_space<smem>>
    %33 = vector.broadcast %32 : f32 to vector<1x1x256xf32>
    %34 = arith.mulf %2, %33 : vector<1x1x256xf32>
    %35 = arith.addf %31, %34 : vector<1x1x256xf32>
    %c1_24 = arith.constant 1 : index
    %c3_25 = arith.constant 3 : index
    %36 = memref.load %arg3[%c1_24, %c3_25] : memref<3x4xf32, #tpu.memory_space<smem>>
    %37 = vector.broadcast %36 : f32 to vector<1x1x256xf32>
    %38 = arith.mulf %3, %37 : vector<1x1x256xf32>
    %39 = arith.addf %35, %38 : vector<1x1x256xf32>
    %c2_26 = arith.constant 2 : index
    %c0_27 = arith.constant 0 : index
    %40 = memref.load %arg3[%c2_26, %c0_27] : memref<3x4xf32, #tpu.memory_space<smem>>
    %41 = vector.broadcast %40 : f32 to vector<1x1x256xf32>
    %42 = arith.mulf %0, %41 : vector<1x1x256xf32>
    %c2_28 = arith.constant 2 : index
    %43 = memref.load %arg4[%c2_28] : memref<3xf32, #tpu.memory_space<smem>>
    %44 = vector.broadcast %43 : f32 to vector<1x1x256xf32>
    %45 = arith.addf %42, %44 : vector<1x1x256xf32>
    %c2_29 = arith.constant 2 : index
    %c1_30 = arith.constant 1 : index
    %46 = memref.load %arg3[%c2_29, %c1_30] : memref<3x4xf32, #tpu.memory_space<smem>>
    %47 = vector.broadcast %46 : f32 to vector<1x1x256xf32>
    %48 = arith.mulf %1, %47 : vector<1x1x256xf32>
    %49 = arith.addf %45, %48 : vector<1x1x256xf32>
    %c2_31 = arith.constant 2 : index
    %c2_32 = arith.constant 2 : index
    %50 = memref.load %arg3[%c2_31, %c2_32] : memref<3x4xf32, #tpu.memory_space<smem>>
    %51 = vector.broadcast %50 : f32 to vector<1x1x256xf32>
    %52 = arith.mulf %2, %51 : vector<1x1x256xf32>
    %53 = arith.addf %49, %52 : vector<1x1x256xf32>
    %c2_33 = arith.constant 2 : index
    %c3_34 = arith.constant 3 : index
    %54 = memref.load %arg3[%c2_33, %c3_34] : memref<3x4xf32, #tpu.memory_space<smem>>
    %55 = vector.broadcast %54 : f32 to vector<1x1x256xf32>
    %56 = arith.mulf %3, %55 : vector<1x1x256xf32>
    %57 = arith.addf %53, %56 : vector<1x1x256xf32>
    %58 = tpu.concatenate %21, %39, %57 in 1 : vector<1x1x256xf32>, vector<1x1x256xf32>, vector<1x1x256xf32> -> vector<1x3x256xf32>
    %c0_35 = arith.constant 0 : index
    %c0_36 = arith.constant 0 : index
    %c0_37 = arith.constant 0 : index
    %59 = vector.load %arg5[%c0_35, %c0_36, %c0_37] : memref<1x3x256xf32, #tpu.memory_space<vmem>>, vector<1x3x256xf32>
    tpu.vector_store %arg5[%c0_35, %c0_36, %c0_37], %58 {strides = array<i32>} : memref<1x3x256xf32, #tpu.memory_space<vmem>>, vector<1x3x256xf32>,
    return
  }
  func.func @transform_0(%arg0: i32, %arg1: i32) -> (i32, i32, i32) {
    %c0_i32 = arith.constant 0 : i32
    %c0_i32_0 = arith.constant 0 : i32
    return %arg0, %c0_i32, %arg1 : i32, i32, i32
  }
  func.func @transform_1(%arg0: i32, %arg1: i32) -> (i32, i32) {
    %c0_i32 = arith.constant 0 : i32
    %c0_i32_0 = arith.constant 0 : i32
    %c0_i32_1 = arith.constant 0 : i32
    return %c0_i32, %c0_i32_0 : i32, i32
  }
  func.func @transform_2(%arg0: i32, %arg1: i32) -> i32 {
    %c0_i32 = arith.constant 0 : i32
    %c0_i32_0 = arith.constant 0 : i32
    return %c0_i32 : i32
  }
  func.func @transform_3(%arg0: i32, %arg1: i32) -> (i32, i32, i32) {
    %c0_i32 = arith.constant 0 : i32
    %c0_i32_0 = arith.constant 0 : i32
    return %arg0, %c0_i32, %arg1 : i32, i32, i32
  }
}

</mosaic_0001>

<llo_original>
// kernel: tpu_custom_call.1
$region0: #{tpu_custom_call.1}
  #allocation0 [shape = 'u32[]', space=smem, size = 0x4, offset = 0x4, fixed_abs, tag = 'smem constant byte address 0x4 - core index']
  #allocation1 [shape = 'u32[144,128]{1,0:T(1,128)}', space=vmem, size = 0x12000, scoped, tag = 'internal scratch']
  %s0 = inlined_call_operand.hbm [shape: f32[2,4,256], index: 0, kind: input, shape index: {}]
  %s1 = inlined_call_operand.hbm [shape: f32[3,4], index: 1, kind: input, shape index: {}]
  %s2 = inlined_call_operand.vmem [shape: f32[3], index: 2, kind: input, shape index: {}]
  %s3 = inlined_call_operand.vmem [shape: f32[2,3,256], index: 3, kind: output, shape index: {}]
  %s4 = sld [smem:[#allocation0]]
  $region57: #{tpu_custom_call.1} parent=0
    _
  %s6 = ssub.s32 1, %s4
  %s7 = scalar_select 0, %s6, %s4
  $region1: #{tpu_custom_call.1} parent=0
    #allocation2 [shape = 'u8[8192]{0}', space=vmem, size = 0x2000, scoped, tag = 'input window, operand 0']
    #allocation3 [shape = 's32[2]{0}', space=sflag, size = 0x8, scoped, tag = 'scoped memory for tpu_custom_call.1']
    #allocation4 [shape = 's32[2]{0}', space=sflag, size = 0x8, scoped, tag = 'scoped memory for tpu_custom_call.1']
    #allocation5 [shape = 's32[2]{0}', space=sflag, size = 0x8, scoped, tag = 'scoped memory for tpu_custom_call.1']
    #allocation6 [shape = 'u8[2048]{0}', space=smem, size = 0x800, scoped, tag = 'input window, operand 1, single buffered']
    #allocation7 [shape = 'u8[512]{0}', space=smem, size = 0x200, scoped, tag = 'input window, operand 2, single buffered']
    %8 = vsyncpa [#allocation3], 0
    %s9 = scalar_lea.sflag [#allocation3], 1
    %10 = vsyncpa %s9, 0
    %11 = vsyncpa [#allocation4], 0
    %12 = vsyncpa [#allocation5], 0
    loop: start=0, step=1, limit=4
    $region2: #{tpu_custom_call.1} parent=1 // loop_pre_header
      _
    $region3: #{tpu_custom_call.1} parent=1 // loop_header
      %s14 = sphi 0, %s18
      %p15 = scmp.ge.s32.totalorder %s14, 4
      %s21 = sphi 0, %s33
      %s22 = sphi 0, %s29
      %s23 = sphi 0, %s21
      %s24 = sphi 0, %s22
      %s25 = sphi 0, %s23
      %s26 = sphi 0, %s24
      %s38 = sphi 0, %s40
      %s41 = sphi 0, %s38
      %s42 = sphi 0, %s41
      %s58 = sphi 0, %s42
      %s62 = sphi 0, %s62
      %s64 = sphi 0, %s62
      %s65 = sphi 0, %s64
      %s79 = sphi 0, %s65
      %s83 = sphi 0, %s83
      %s85 = sphi 0, %s83
      %s86 = sphi 0, %s85
      %s100 = sphi 0, %s86
      %s108 = sphi 0, %s110
      %s111 = sphi 0, %s108
      %s112 = sphi 0, %s111
      %s128 = sphi 0, %s112
    $region4: #{tpu_custom_call.1} parent=1 // loop_header_branch
      %17 = sbr.rel (%p15) target = $region8
    $region5: #{tpu_custom_call.1} parent=1 // loop_body
      %s19 = ssub.s32 %s14, 1
      %s20 = ssub.s32 %s14, 2
      %s27 = sadd.s32 1, %s22
      %p28 = scmp.ge.s32.totalorder %s27, 1
      %s29 = scalar_select %p28, 0, %s27
      %s30 = sadd.s32 1, %s21
      %s31 = scalar_select %p28, %s30, %s21
      %p32 = scmp.ge.s32.totalorder %s31, 2
      %s33 = scalar_select %p32, 0, %s31
      %s34 = ssub.s32 %s21, %s33
      %s35 = ssub.s32 %s22, %s29
      %s36 = sor.u32 %s34, %s35
      %p37 = scmp.eq.s32.totalorder %s36, 0
      %s39 = sadd.s32 %s38, 1
      %s40 = scalar_select %p37, %s38, %s39
      %p43 = pneg %p37
      %p44 = scmp.eq.s32.totalorder %s14, 1
      %p45 = por %p43, %p44
      %p46 = scmp.ne.s32.totalorder %s38, %s41
      %p47 = scmp.eq.s32.totalorder %s14, 0
      %p48 = por %p46, %p47
      %p49 = scmp.ne.s32.totalorder %s38, %s41
      %p50 = scmp.eq.s32.totalorder %s19, 1
      %p51 = por %p49, %p50
      %p52 = scmp.ne.s32.totalorder %s41, %s42
      %p53 = scmp.eq.s32.totalorder %s19, 0
      %p54 = por %p52, %p53
      %p55 = scmp.ne.s32.totalorder %s41, %s42
      %p56 = scmp.eq.s32.totalorder %s20, 1
      %p57 = por %p55, %p56
      %p59 = scmp.ne.s32.totalorder %s42, %s58
      %p60 = scmp.eq.s32.totalorder %s20, 0
      %p61 = por %p59, %p60
      %s63 = sadd.s32 %s62, 1
      %p66 = scmp.eq.s32.totalorder %s14, 1
      %p67 = scmp.ne.s32.totalorder %s62, %s64
      %p68 = scmp.eq.s32.totalorder %s14, 0
      %p69 = por %p67, %p68
      %p70 = scmp.ne.s32.totalorder %s62, %s64
      %p71 = scmp.eq.s32.totalorder %s19, 1
      %p72 = por %p70, %p71
      %p73 = scmp.ne.s32.totalorder %s64, %s65
      %p74 = scmp.eq.s32.totalorder %s19, 0
      %p75 = por %p73, %p74
      %p76 = scmp.ne.s32.totalorder %s64, %s65
      %p77 = scmp.eq.s32.totalorder %s20, 1
      %p78 = por %p76, %p77
      %p80 = scmp.ne.s32.totalorder %s65, %s79
      %p81 = scmp.eq.s32.totalorder %s20, 0
      %p82 = por %p80, %p81
      %s84 = sadd.s32 %s83, 1
      %p87 = scmp.eq.s32.totalorder %s14, 1
      %p88 = scmp.ne.s32.totalorder %s83, %s85
      %p89 = scmp.eq.s32.totalorder %s14, 0
      %p90 = por %p88, %p89
      %p91 = scmp.ne.s32.totalorder %s83, %s85
      %p92 = scmp.eq.s32.totalorder %s19, 1
      %p93 = por %p91, %p92
      %p94 = scmp.ne.s32.totalorder %s85, %s86
      %p95 = scmp.eq.s32.totalorder %s19, 0
      %p96 = por %p94, %p95
      %p97 = scmp.ne.s32.totalorder %s85, %s86
      %p98 = scmp.eq.s32.totalorder %s20, 1
      %p99 = por %p97, %p98
      %p101 = scmp.ne.s32.totalorder %s86, %s100
      %p102 = scmp.eq.s32.totalorder %s20, 0
      %p103 = por %p101, %p102
      %s104 = ssub.s32 %s21, %s33
      %s105 = ssub.s32 %s22, %s29
      %s106 = sor.u32 %s104, %s105
      %p107 = scmp.eq.s32.totalorder %s106, 0
      %s109 = sadd.s32 %s108, 1
      %s110 = scalar_select %p107, %s108, %s109
      %p113 = pneg %p107
      %p114 = scmp.eq.s32.totalorder %s14, 1
      %p115 = por %p113, %p114
      %p116 = scmp.ne.s32.totalorder %s108, %s111
      %p117 = scmp.eq.s32.totalorder %s14, 0
      %p118 = por %p116, %p117
      %p119 = scmp.ne.s32.totalorder %s108, %s111
      %p120 = scmp.eq.s32.totalorder %s19, 1
      %p121 = por %p119, %p120
      %p122 = scmp.ne.s32.totalorder %s111, %s112
      %p123 = scmp.eq.s32.totalorder %s19, 0
      %p124 = por %p122, %p123
      %p125 = scmp.ne.s32.totalorder %s111, %s112
      %p126 = scmp.eq.s32.totalorder %s20, 1
      %p127 = por %p125, %p126
      %p129 = scmp.ne.s32.totalorder %s112, %s128
      %p130 = scmp.eq.s32.totalorder %s20, 0
      %p131 = por %p129, %p130
      %p132 = scmp.le.s32.totalorder 1, %s14
      %p133 = scmp.lt.s32.totalorder %s14, 3
      %p134 = pnand %p132, %p133
      %p135 = pneg %p134
      // Predicated region
      $region9: #{tpu_custom_call.1} parent=5 // pred_check
        _
      $region10: #{tpu_custom_call.1} parent=5 // pred_check_branch
        %137 = sbr.rel (%p134) target = $region12
      $region11: #{tpu_custom_call.1} parent=5 // pred_region
        %s138 = ssub.s32 %s14, 1
        // Predicated region
        $region13: #{tpu_custom_call.1} parent=11 // pred_check
          %p139 = pneg %p75
        $region14: #{tpu_custom_call.1} parent=11 // pred_check_branch
          %141 = sbr.rel (%p139) target = $region16
        $region15: #{tpu_custom_call.1} parent=11 // pred_region
          %s143 = ssub.s32 64, 64
          %144 = vsyncadd [#allocation4], %s143
          %147 = dma.hbm_to_smem %s1, 64, [#allocation6], [#allocation4]
        $region16: #{tpu_custom_call.1} parent=11 // pred_fallthru
          _
        // Predicated region
        $region17: #{tpu_custom_call.1} parent=11 // pred_check
          %p148 = pneg %p96
        $region18: #{tpu_custom_call.1} parent=11 // pred_check_branch
          %150 = sbr.rel (%p148) target = $region20
        $region19: #{tpu_custom_call.1} parent=11 // pred_region
          %s152 = ssub.s32 16, 16
          %153 = vsyncadd [#allocation5], %s152
          %s155 = sshll.u32 %s2, 4
          %s156 = int_to_ptr.vmem [resolvable:$true] %s155
          %158 = dma.vmem_to_smem %s156, 16, [#allocation7], [#allocation5]
        $region20: #{tpu_custom_call.1} parent=11 // pred_fallthru
          _
      $region12: #{tpu_custom_call.1} parent=5 // pred_fallthru
        _
      %p159 = scmp.lt.s32.totalorder %s14, 2
      // Predicated region
      $region21: #{tpu_custom_call.1} parent=5 // pred_check
        %p160 = pneg %p159
      $region22: #{tpu_custom_call.1} parent=5 // pred_check_branch
        %162 = sbr.rel (%p160) target = $region24
      $region23: #{tpu_custom_call.1} parent=5 // pred_region
        // Predicated region
        $region25: #{tpu_custom_call.1} parent=23 // pred_check
          %p163 = pneg %p48
        $region26: #{tpu_custom_call.1} parent=23 // pred_check_branch
          %165 = sbr.rel (%p163) target = $region28
        $region27: #{tpu_custom_call.1} parent=23 // pred_region
          %s166 = sand.u32 %s38, 1
          %s167 = scalar_lea.sflag [#allocation3], %s166
          %s168 = sand.u32 %s38, 1
          %s169 = smul.addr %s168, 8
          %s170 = scalar_lea.vmem [#allocation2], %s169
          %s171 = smul.u32 2, %s22
          %s173 = ssub.s32 128, 128
          %174 = vsyncadd %s167, %s173
          %s175 = smul.addr %s21, 2
          %s176 = sadd.s32 %s171, %s175
          %s177 = smul.addr %s176, 64
          %s178 = scalar_lea.hbm %s0, %s177
          %s180 = sshll.u32 %s170, 4
          %s181 = int_to_ptr.vmem [resolvable:$true] %s180
          %183 = dma.hbm_to_vmem [thread:$0]  %s178, 128, %s181, %s167
        $region28: #{tpu_custom_call.1} parent=23 // pred_fallthru
          _
      $region24: #{tpu_custom_call.1} parent=5 // pred_fallthru
        _
      %p184 = scmp.le.s32.totalorder 1, %s14
      %p185 = scmp.lt.s32.totalorder %s14, 3
      %p186 = pnand %p184, %p185
      %p187 = pneg %p186
      // Predicated region
      $region29: #{tpu_custom_call.1} parent=5 // pred_check
        _
      $region30: #{tpu_custom_call.1} parent=5 // pred_check_branch
        %189 = sbr.rel (%p186) target = $region32
      $region31: #{tpu_custom_call.1} parent=5 // pred_region
        %s190 = ssub.s32 %s14, 1
        %s191 = sand.u32 %s41, 1
        %s192 = scalar_lea.sflag [#allocation3], %s191
        %s193 = sand.u32 %s41, 1
        %s194 = smul.addr %s193, 8
        %s195 = scalar_lea.vmem [#allocation2], %s194
        // Predicated region
        $region33: #{tpu_custom_call.1} parent=31 // pred_check
          %p196 = pneg %p54
        $region34: #{tpu_custom_call.1} parent=31 // pred_check_branch
          %198 = sbr.rel (%p196) target = $region36
        $region35: #{tpu_custom_call.1} parent=31 // pred_region
          %199 = dma.done %s192, 128
        $region36: #{tpu_custom_call.1} parent=31 // pred_fallthru
          _
        // Predicated region
        $region37: #{tpu_custom_call.1} parent=31 // pred_check
          %p200 = pneg %p75
        $region38: #{tpu_custom_call.1} parent=31 // pred_check_branch
          %202 = sbr.rel (%p200) target = $region40
        $region39: #{tpu_custom_call.1} parent=31 // pred_region
          %203 = dma.done [#allocation4], 64
        $region40: #{tpu_custom_call.1} parent=31 // pred_fallthru
          _
        // Predicated region
        $region41: #{tpu_custom_call.1} parent=31 // pred_check
          %p204 = pneg %p96
        $region42: #{tpu_custom_call.1} parent=31 // pred_check_branch
          %206 = sbr.rel (%p204) target = $region44
        $region43: #{tpu_custom_call.1} parent=31 // pred_region
          %207 = dma.done [#allocation5], 16
        $region44: #{tpu_custom_call.1} parent=31 // pred_fallthru
          _
        %208 = sfence
        %s209 = sand.u32 %s41, 1
        %s210 = scalar_lea.sflag [#allocation3], %s209
        %s211 = sand.u32 %s41, 1
        %s212 = smul.addr %s211, 8
        %s213 = scalar_lea.vmem [#allocation2], %s212
        %p214 = pneg %p54
        %p215 = pneg %p51
        %p216 = pneg %p75
        %p217 = pneg %p72
        %p218 = pneg %p96
        %p219 = pneg %p93
        %p220 = pneg %p124
        %p221 = pneg %p121
        %s222 = smul.u32 2, %s24
        %p223 = scmp.lt.s32.totalorder %s23, 1
        %s224 = scalar_select %p223, %s23, 1
        %p225 = scmp.lt.s32.totalorder %s222, 1
        %s226 = scalar_select %p225, %s222, 1
        %s227 = smul.addr %s224, 2
        %s228 = sadd.s32 %s226, %s227
        %s229 = smul.addr %s228, 4
        %s230 = scalar_lea.vmem %s3, %s229
        %s231 = smul.u32 2, %s24
        %s232 = smul.u32 2, %s24
        %p233 = scmp.lt.s32.totalorder %s23, 1
        %s234 = scalar_select %p233, %s23, 1
        %p235 = scmp.lt.s32.totalorder %s232, 1
        %s236 = scalar_select %p235, %s232, 1
        %s237 = smul.addr %s234, 2
        %s238 = sadd.s32 %s236, %s237
        %s239 = smul.addr %s238, 4
        %s240 = scalar_lea.vmem %s3, %s239
        %s241 = smul.u32 2, %s24
        %v242 = vld [vmem:[%s195] ss:$4 sm:$0x3]
        %s243 = scalar_lea.vmem %s195, 1 [#allocation2]
        %v244 = vld [vmem:[%s243] ss:$4 sm:$0x3]
        %s245 = scalar_lea.vmem %s195, 2 [#allocation2]
        %v246 = vld [vmem:[%s245] ss:$4 sm:$0x3]
        %s247 = scalar_lea.vmem %s195, 3 [#allocation2]
        %v248 = vld [vmem:[%s247] ss:$4 sm:$0x3]
        %s249 = sld [smem:[#allocation6]]
        %v250 = vstv %s249
        %v251 = vmul.f32 %v242, %v250
        %s252 = sld [smem:[#allocation7]]
        %v253 = vstv %s252
        %v254 = vadd.f32 %v251, %v253
        %s255 = sld [smem:[#allocation6 + $0x1]]
        %v256 = vstv %s255
        %v257 = vmul.f32 %v244, %v256
        %v258 = vadd.f32 %v254, %v257
        %s259 = sld [smem:[#allocation6 + $0x2]]
        %v260 = vstv %s259
        %v261 = vmul.f32 %v246, %v260
        %v262 = vadd.f32 %v258, %v261
        %s263 = sld [smem:[#allocation6 + $0x3]]
        %v264 = vstv %s263
        %v265 = vmul.f32 %v248, %v264
        %v266 = vadd.f32 %v262, %v265
        %s267 = sld [smem:[#allocation6 + $0x80]]
        %v268 = vstv %s267
        %v269 = vmul.f32 %v242, %v268
        %s270 = sld [smem:[#allocation7 + $0x1]]
        %v271 = vstv %s270
        %v272 = vadd.f32 %v269, %v271
        %s273 = sld [smem:[#allocation6 + $0x81]]
        %v274 = vstv %s273
        %v275 = vmul.f32 %v244, %v274
        %v276 = vadd.f32 %v272, %v275
        %s277 = sld [smem:[#allocation6 + $0x82]]
        %v278 = vstv %s277
        %v279 = vmul.f32 %v246, %v278
        %v280 = vadd.f32 %v276, %v279
        %s281 = sld [smem:[#allocation6 + $0x83]]
        %v282 = vstv %s281
        %v283 = vmul.f32 %v248, %v282
        %v284 = vadd.f32 %v280, %v283
        %s285 = sld [smem:[#allocation6 + $0x100]]
        %v286 = vstv %s285
        %v287 = vmul.f32 %v242, %v286
        %s288 = sld [smem:[#allocation7 + $0x2]]
        %v289 = vstv %s288
        %v290 = vadd.f32 %v287, %v289
        %s291 = sld [smem:[#allocation6 + $0x101]]
        %v292 = vstv %s291
        %v293 = vmul.f32 %v244, %v292
        %v294 = vadd.f32 %v290, %v293
        %s295 = sld [smem:[#allocation6 + $0x102]]
        %v296 = vstv %s295
        %v297 = vmul.f32 %v246, %v296
        %v298 = vadd.f32 %v294, %v297
        %s299 = sld [smem:[#allocation6 + $0x103]]
        %v300 = vstv %s299
        %v301 = vmul.f32 %v248, %v300
        %v302 = vadd.f32 %v298, %v301
        %v304 = vlaneseq
        %v305 = vshrl.u32 %v304, 7
        %v306 = vsub.s32 0, %v305
        %v307 = vrot.slane %v266, %v306
        %v308 = vlaneseq
        %v309 = vshrl.u32 %v308, 7
        %v310 = vsub.s32 1, %v309
        %v311 = vrot.slane %v266, %v310
        %v315 = vlaneseq
        %v316 = vshrl.u32 %v315, 7
        %v317 = vsub.s32 0, %v316
        %v318 = vrot.slane %v284, %v317
        %v319 = vlaneseq
        %v320 = vshrl.u32 %v319, 7
        %v321 = vsub.s32 1, %v320
        %v322 = vrot.slane %v284, %v321
        %v326 = vlaneseq
        %v327 = vshrl.u32 %v326, 7
        %v328 = vsub.s32 0, %v327
        %v329 = vrot.slane %v302, %v328
        %v330 = vlaneseq
        %v331 = vshrl.u32 %v330, 7
        %v332 = vsub.s32 1, %v331
        %v333 = vrot.slane %v302, %v332
        %vm336 = vcmask 1040384
        %v337 = vsel %vm336, %v307, %v318
        %v338 = vsel %vm336, %v311, %v322
        %vm339 = vcmask 1041408
        %v340 = vsel %vm339, %v337, %v329
        %v341 = vsel %vm339, %v338, %v333
        %v344 = vcombine.low %v340, %v341
        %346 = vst [vmem:[%s240] sm:$0x77] %v344
        %s347 = smul.u32 2, %s24
        %p348 = scmp.lt.s32.totalorder %s23, 1
        %s349 = scalar_select %p348, %s23, 1
        %p350 = scmp.lt.s32.totalorder %s347, 1
        %s351 = scalar_select %p350, %s347, 1
        %s352 = smul.addr %s349, 2
        %s353 = sadd.s32 %s351, %s352
        %s354 = smul.addr %s353, 4
        %s355 = scalar_lea.vmem %s3, %s354
        // Predicated region
        $region45: #{tpu_custom_call.1} parent=31 // pred_check
          %p356 = pneg %p121
        $region46: #{tpu_custom_call.1} parent=31 // pred_check_branch
          %358 = sbr.rel (%p356) target = $region48
        $region47: #{tpu_custom_call.1} parent=31 // pred_region
          %s359 = smul.u32 2, %s24
        $region48: #{tpu_custom_call.1} parent=31 // pred_fallthru
          _
      $region32: #{tpu_custom_call.1} parent=5 // pred_fallthru
        _
      %p360 = scmp.le.s32.totalorder 2, %s14
      // Predicated region
      $region49: #{tpu_custom_call.1} parent=5 // pred_check
        %p361 = pneg %p360
      $region50: #{tpu_custom_call.1} parent=5 // pred_check_branch
        %363 = sbr.rel (%p361) target = $region52
      $region51: #{tpu_custom_call.1} parent=5 // pred_region
        %s364 = ssub.s32 %s14, 2
        // Predicated region
        $region53: #{tpu_custom_call.1} parent=51 // pred_check
          %p365 = pneg %p127
        $region54: #{tpu_custom_call.1} parent=51 // pred_check_branch
          %367 = sbr.rel (%p365) target = $region56
        $region55: #{tpu_custom_call.1} parent=51 // pred_region
          %s368 = smul.u32 2, %s26
          %p369 = scmp.lt.s32.totalorder %s25, 1
          %s370 = scalar_select %p369, %s25, 1
          %p371 = scmp.lt.s32.totalorder %s368, 1
          %s372 = scalar_select %p371, %s368, 1
          %s373 = smul.addr %s370, 2
          %s374 = sadd.s32 %s372, %s373
          %s375 = smul.addr %s374, 4
          %s376 = scalar_lea.vmem %s3, %s375
        $region56: #{tpu_custom_call.1} parent=51 // pred_fallthru
          _
      $region52: #{tpu_custom_call.1} parent=5 // pred_fallthru
        _
    $region6: #{tpu_custom_call.1} parent=1 // loop_footer
      %s18 = sadd.s32 1, %s14
    $region7: #{tpu_custom_call.1} parent=1 // loop_footer_branch
      %13 = sbr.rel target = $region3
    $region8: #{tpu_custom_call.1} parent=1 // loop_exit
      _
    %377 = vsyncpa [#allocation3], 1
    %s378 = scalar_lea.sflag [#allocation3], 1
    %379 = vsyncpa %s378, 1
    %380 = vsyncpa [#allocation4], 1
    %s381 = scalar_lea.sflag [#allocation4], 1
    %382 = vsyncpa %s381, 1
    %383 = vsyncpa [#allocation5], 1
    %s384 = scalar_lea.sflag [#allocation5], 1
    %385 = vsyncpa %s384, 1

</llo_original>
